<compile_context>
chip_gen: v7x
topology: tpu7x:2x2x1
jax: 0.10.0
libtpu: 0.0.40
codegen_flags: <defaults>
</compile_context>

<pallas_src>
import functools
import operator

import jax
import jax.numpy as jnp
from jax import lax
from jax.experimental import pallas as pl
from jax.experimental.pallas import tpu as pltpu


def _perm_indices(dims):
    """Flat gather indices equivalent to view(dims) -> cyclic-left permute -> flatten."""
    n = len(dims)
    perm = tuple((i + 1) % n for i in range(n))
    D = functools.reduce(operator.mul, dims)
    idx = jnp.arange(D, dtype=jnp.int32).reshape(dims)
    return jnp.transpose(idx, perm).reshape(-1)


def fold_params(weights, biases, dims):
    """Fold the cyclic feature permutation into every layer's weight columns /
    bias.  Call ONCE (e.g. at parameter-initialization time), not per forward."""
    idx = _perm_indices(dims)
    L = len(weights)
    D = idx.shape[0]
    w_stack = jnp.stack([jnp.asarray(w)[:, idx] for w in weights]).astype(jnp.bfloat16)
    b_stack = jnp.stack([jnp.asarray(b)[idx] for b in biases]).astype(jnp.float32)
    return w_stack, b_stack.reshape(L, 1, D)


# ------------------------------ Pallas kernel --------------------------------

def _hypercuboid_kernel(x_ref, w_ref, b_ref, o_ref):
    # x_ref: (TB, D)    f32   input batch tile (read once)
    # w_ref: (L, D, D)  bf16  permutation-folded weights, VMEM-resident
    # b_ref: (L, 1, D)  f32   permutation-folded biases,  VMEM-resident
    # o_ref: (TB, D)    f32   output tile; doubles as the resident activation buffer
    o_ref[...] = x_ref[...].astype(jnp.float32)
    n_layers = w_ref.shape[0]

    def layer_step(l, carry):
        h = o_ref[...]
        acc = jnp.dot(h.astype(jnp.bfloat16), w_ref[l],
                      preferred_element_type=jnp.float32)
        o_ref[...] = acc + b_ref[l]          # bias add in f32 (VPU, v5e-safe)
        return carry

    lax.fori_loop(0, n_layers, layer_step, 0, unroll=True)


def hypercuboid_forward(x, w_stack, b_stack, *, block_b=256):
    """x: (B, D) f32.  w_stack: (L, D, D) bf16, b_stack: (L, 1, D) f32 (pre-folded)."""
    B, D = x.shape
    L = w_stack.shape[0]
    assert x.dtype == jnp.float32, "o_ref doubles as the f32 activation buffer"
    assert w_stack.shape == (L, D, D) and b_stack.shape == (L, 1, D)

    # Batch tile: fill the MXU (256 rows on v6e/v7x) when B allows.
    tb = min(block_b, B)
    # v7x megacore: ensure >= 2 batch tiles on the "parallel" axis when the whole
    # batch would otherwise be one tile (second TensorCore would idle).
    if tb == B and B >= 16 and (B // 2) % 8 == 0:
        tb = B // 2
    grid = (pl.cdiv(B, tb),)

    # Explicit VMEM budget: resident weight/bias stacks (budgeted 2x for the
    # pipeline's buffer allocation) + double-buffered x/out tiles + headroom.
    weight_bytes = L * D * D * 2 + L * D * 4
    act_bytes = 2 * (2 * tb * D * 4)
    needed = 2 * weight_bytes + act_bytes
    assert needed <= (56 << 20), "weight stack does not fit VMEM; needs K-tiled variant"
    vmem_limit = int(min(max(needed + (2 << 20), 16 << 20), 56 << 20))
    # TODO(synk): for large D (>= ~2048 on v7x's 64 MiB VMEM, ~4096 on v5e/v6e's
    # 128 MiB) the resident (L, D, D) weight stack no longer fits: add a
    # K-reduction grid axis with (TK, TN) weight tiles + an f32 accumulator
    # scratch (pl.when init/finalize) and stream weights (pl.Buffered(3) on v5e).

    cost = pl.CostEstimate(
        flops=2 * L * B * D * D,
        transcendentals=0,
        bytes_accessed=(B * D * 4            # x read once per batch tile
                        + B * D * 4          # output written once
                        + L * D * D * 2      # bf16 weights, resident -> one read
                        + L * D * 4),        # f32 biases
    )

    return pl.pallas_call(
        _hypercuboid_kernel,
        out_shape=jax.ShapeDtypeStruct((B, D), x.dtype),
        grid_spec=pltpu.PrefetchScalarGridSpec(
            num_scalar_prefetch=0,
            grid=grid,
            in_specs=[
                pl.BlockSpec((tb, D), lambda b: (b, 0)),        # x batch tile
                pl.BlockSpec((L, D, D), lambda b: (0, 0, 0)),   # resident weights
                pl.BlockSpec((L, 1, D), lambda b: (0, 0, 0)),   # resident biases
            ],
            out_specs=pl.BlockSpec((tb, D), lambda b: (b, 0)),
        ),
        compiler_params=pltpu.CompilerParams(
            dimension_semantics=("parallel",),
            vmem_limit_bytes=vmem_limit),
        cost_estimate=cost,
    )(x, w_stack, b_stack)


# -------------------------------- reference ----------------------------------

def hypercuboid_reference(x, weights, biases, dims):
    """Pure-JAX reference with the ORIGINAL (un-folded) view/permute/view
    semantics and matched matmul numerics (bf16 inputs, f32 accumulation)."""
    B, D = x.shape
    n = len(dims)
    perm = tuple((i + 1) % n for i in range(n))
    for W, b in zip(weights, biases):
        y = jnp.dot(x.astype(jnp.bfloat16), W.astype(jnp.bfloat16),
                    preferred_element_type=jnp.float32) + b.astype(jnp.float32)
        y = y.reshape((B,) + tuple(dims))
        y = jnp.transpose(y, (0,) + tuple(p + 1 for p in perm))
        x = y.reshape(B, D)
    return x


# ----------------------------------- main -------------------------------------

if __name__ == "__main__":
    dims = (4, 4, 8)                       # feature cuboid, D = 128 (lane-dense)
    D = functools.reduce(operator.mul, dims)
    B = 16                                 # batch (multiple of 8)
    n_layers = 3

    key = jax.random.PRNGKey(0)
    kx, *kws = jax.random.split(key, 1 + 2 * n_layers)
    x = jax.random.normal(kx, (B, D), dtype=jnp.float32)

    bound = 1.0 / (D ** 0.5)               # ~ nn.Linear uniform init bound
    weights, biases = [], []
    for li in range(n_layers):
        kw, kb = kws[2 * li], kws[2 * li + 1]
        weights.append(jax.random.uniform(kw, (D, D), jnp.float32, -bound, bound))
        biases.append(jax.random.uniform(kb, (D,), jnp.float32, -bound, bound))

    # Fold the permutation into the parameters ONCE (outside the hot path).
    w_stack, b_stack = fold_params(weights, biases, dims)
    w_stack, b_stack = jax.block_until_ready((w_stack, b_stack))

    out = jax.block_until_ready(hypercuboid_forward(x, w_stack, b_stack))

    ref = jax.block_until_ready(hypercuboid_reference(x, weights, biases, dims))
    assert out.shape == (B, D)
    max_err = float(jnp.max(jnp.abs(out - ref)))
    assert jnp.allclose(out, ref, atol=2e-3, rtol=2e-3), max_err

    print("KERNEL_OK")
</pallas_src>

<mosaic_0001>
module attributes {stable_mosaic.version = 11 : i64} {
  func.func @_hypercuboid_kernel(%arg0: i32, %arg1: memref<8x128xf32, #tpu.memory_space<vmem>>, %arg2: memref<3x128x128xbf16, #tpu.memory_space<vmem>>, %arg3: memref<3x1x128xf32, #tpu.memory_space<vmem>>, %arg4: memref<8x128xf32, #tpu.memory_space<vmem>>) attributes {dimension_semantics = [#tpu.dimension_semantics<parallel>], iteration_bounds = array<i64: 2>, scalar_prefetch = 0 : i64, scratch_operands = 0 : i64, tpu.core_type = #tpu.core_type<tc>, window_params = [{transform_indices = @transform_0, window_bounds = array<i64: 8, 128>}, {pipeline_mode = #tpu.pipeline_mode<synchronous>, transform_indices = @transform_1, window_bounds = array<i64: 3, 128, 128>}, {pipeline_mode = #tpu.pipeline_mode<synchronous>, transform_indices = @transform_2, window_bounds = array<i64: 3, 1, 128>}, {transform_indices = @transform_3, window_bounds = array<i64: 8, 128>}]} {
    %c0 = arith.constant 0 : index
    %c0_0 = arith.constant 0 : index
    %0 = vector.load %arg1[%c0, %c0_0] : memref<8x128xf32, #tpu.memory_space<vmem>>, vector<8x128xf32>
    %c0_1 = arith.constant 0 : index
    %c0_2 = arith.constant 0 : index
    %1 = vector.load %arg4[%c0_1, %c0_2] : memref<8x128xf32, #tpu.memory_space<vmem>>, vector<8x128xf32>
    tpu.vector_store %arg4[%c0_1, %c0_2], %0 {strides = array<i32>} : memref<8x128xf32, #tpu.memory_space<vmem>>, vector<8x128xf32>,
    %c0_i32 = arith.constant 0 : i32
    %c0_3 = arith.constant 0 : index
    %c0_4 = arith.constant 0 : index
    %2 = vector.load %arg4[%c0_3, %c0_4] : memref<8x128xf32, #tpu.memory_space<vmem>>, vector<8x128xf32>
    %3 = arith.truncf %2 : vector<8x128xf32> to vector<8x128xbf16>
    %4 = arith.index_cast %c0_i32 : i32 to index
    %c0_5 = arith.constant 0 : index
    %c0_6 = arith.constant 0 : index
    %5 = vector.load %arg2[%4, %c0_5, %c0_6] : memref<3x128x128xbf16, #tpu.memory_space<vmem>>, vector<1x128x128xbf16>
    %6 = vector.shape_cast %5 : vector<1x128x128xbf16> to vector<128x128xbf16>
    %cst = arith.constant dense<0.000000e+00> : vector<8x128xf32>
    %7 = tpu.matmul %3, %6, %cst {dimension_numbers = #tpu.dot_dimension_numbers<[1], [0], [0], [1], [0, 0, 1, 1], [], []>} : vector<8x128xbf16>, vector<128x128xbf16>, vector<8x128xf32> -> vector<8x128xf32>
    %8 = arith.index_cast %c0_i32 : i32 to index
    %c0_7 = arith.constant 0 : index
    %c0_8 = arith.constant 0 : index
    %9 = vector.load %arg3[%8, %c0_7, %c0_8] : memref<3x1x128xf32, #tpu.memory_space<vmem>>, vector<1x1x128xf32>
    %10 = vector.shape_cast %9 : vector<1x1x128xf32> to vector<1x128xf32>
    %11 = vector.broadcast %10 : vector<1x128xf32> to vector<8x128xf32>
    %12 = arith.addf %7, %11 : vector<8x128xf32>
    %c0_9 = arith.constant 0 : index
    %c0_10 = arith.constant 0 : index
    %13 = vector.load %arg4[%c0_9, %c0_10] : memref<8x128xf32, #tpu.memory_space<vmem>>, vector<8x128xf32>
    tpu.vector_store %arg4[%c0_9, %c0_10], %12 {strides = array<i32>} : memref<8x128xf32, #tpu.memory_space<vmem>>, vector<8x128xf32>,
    %c1_i32 = arith.constant 1 : i32
    %c0_11 = arith.constant 0 : index
    %c0_12 = arith.constant 0 : index
    %14 = vector.load %arg4[%c0_11, %c0_12] : memref<8x128xf32, #tpu.memory_space<vmem>>, vector<8x128xf32>
    %15 = arith.truncf %14 : vector<8x128xf32> to vector<8x128xbf16>
    %16 = arith.index_cast %c1_i32 : i32 to index
    %c0_13 = arith.constant 0 : index
    %c0_14 = arith.constant 0 : index
    %17 = vector.load %arg2[%16, %c0_13, %c0_14] : memref<3x128x128xbf16, #tpu.memory_space<vmem>>, vector<1x128x128xbf16>
    %18 = vector.shape_cast %17 : vector<1x128x128xbf16> to vector<128x128xbf16>
    %cst_15 = arith.constant dense<0.000000e+00> : vector<8x128xf32>
    %19 = tpu.matmul %15, %18, %cst_15 {dimension_numbers = #tpu.dot_dimension_numbers<[1], [0], [0], [1], [0, 0, 1, 1], [], []>} : vector<8x128xbf16>, vector<128x128xbf16>, vector<8x128xf32> -> vector<8x128xf32>
    %20 = arith.index_cast %c1_i32 : i32 to index
    %c0_16 = arith.constant 0 : index
    %c0_17 = arith.constant 0 : index
    %21 = vector.load %arg3[%20, %c0_16, %c0_17] : memref<3x1x128xf32, #tpu.memory_space<vmem>>, vector<1x1x128xf32>
    %22 = vector.shape_cast %21 : vector<1x1x128xf32> to vector<1x128xf32>
    %23 = vector.broadcast %22 : vector<1x128xf32> to vector<8x128xf32>
    %24 = arith.addf %19, %23 : vector<8x128xf32>
    %c0_18 = arith.constant 0 : index
    %c0_19 = arith.constant 0 : index
    %25 = vector.load %arg4[%c0_18, %c0_19] : memref<8x128xf32, #tpu.memory_space<vmem>>, vector<8x128xf32>
    tpu.vector_store %arg4[%c0_18, %c0_19], %24 {strides = array<i32>} : memref<8x128xf32, #tpu.memory_space<vmem>>, vector<8x128xf32>,
    %c2_i32 = arith.constant 2 : i32
    %c0_20 = arith.constant 0 : index
    %c0_21 = arith.constant 0 : index
    %26 = vector.load %arg4[%c0_20, %c0_21] : memref<8x128xf32, #tpu.memory_space<vmem>>, vector<8x128xf32>
    %27 = arith.truncf %26 : vector<8x128xf32> to vector<8x128xbf16>
    %28 = arith.index_cast %c2_i32 : i32 to index
    %c0_22 = arith.constant 0 : index
    %c0_23 = arith.constant 0 : index
    %29 = vector.load %arg2[%28, %c0_22, %c0_23] : memref<3x128x128xbf16, #tpu.memory_space<vmem>>, vector<1x128x128xbf16>
    %30 = vector.shape_cast %29 : vector<1x128x128xbf16> to vector<128x128xbf16>
    %cst_24 = arith.constant dense<0.000000e+00> : vector<8x128xf32>
    %31 = tpu.matmul %27, %30, %cst_24 {dimension_numbers = #tpu.dot_dimension_numbers<[1], [0], [0], [1], [0, 0, 1, 1], [], []>} : vector<8x128xbf16>, vector<128x128xbf16>, vector<8x128xf32> -> vector<8x128xf32>
    %32 = arith.index_cast %c2_i32 : i32 to index
    %c0_25 = arith.constant 0 : index
    %c0_26 = arith.constant 0 : index
    %33 = vector.load %arg3[%32, %c0_25, %c0_26] : memref<3x1x128xf32, #tpu.memory_space<vmem>>, vector<1x1x128xf32>
    %34 = vector.shape_cast %33 : vector<1x1x128xf32> to vector<1x128xf32>
    %35 = vector.broadcast %34 : vector<1x128xf32> to vector<8x128xf32>
    %36 = arith.addf %31, %35 : vector<8x128xf32>
    %c0_27 = arith.constant 0 : index
    %c0_28 = arith.constant 0 : index
    %37 = vector.load %arg4[%c0_27, %c0_28] : memref<8x128xf32, #tpu.memory_space<vmem>>, vector<8x128xf32>
    tpu.vector_store %arg4[%c0_27, %c0_28], %36 {strides = array<i32>} : memref<8x128xf32, #tpu.memory_space<vmem>>, vector<8x128xf32>,
    %c3_i32 = arith.constant 3 : i32
    return
  }
  func.func @transform_0(%arg0: i32) -> (i32, i32) {
    %c0_i32 = arith.constant 0 : i32
    %c0_i32_0 = arith.constant 0 : i32
    return %arg0, %c0_i32 : i32, i32
  }
  func.func @transform_1(%arg0: i32) -> (i32, i32, i32) {
    %c0_i32 = arith.constant 0 : i32
    %c0_i32_0 = arith.constant 0 : i32
    %c0_i32_1 = arith.constant 0 : i32
    %c0_i32_2 = arith.constant 0 : i32
    return %c0_i32, %c0_i32_0, %c0_i32_1 : i32, i32, i32
  }
  func.func @transform_2(%arg0: i32) -> (i32, i32, i32) {
    %c0_i32 = arith.constant 0 : i32
    %c0_i32_0 = arith.constant 0 : i32
    %c0_i32_1 = arith.constant 0 : i32
    %c0_i32_2 = arith.constant 0 : i32
    return %c0_i32, %c0_i32_0, %c0_i32_1 : i32, i32, i32
  }
  func.func @transform_3(%arg0: i32) -> (i32, i32) {
    %c0_i32 = arith.constant 0 : i32
    %c0_i32_0 = arith.constant 0 : i32
    return %arg0, %c0_i32 : i32, i32
  }
}

</mosaic_0001>

<llo_original>
// kernel: tpu_custom_call.1
$region0: #{tpu_custom_call.1}
  #allocation0 [shape = 'u32[]', space=smem, size = 0x4, offset = 0x4, fixed_abs, tag = 'smem constant byte address 0x4 - core index']
  #allocation1 [shape = 'u32[144,128]{1,0:T(1,128)}', space=vmem, size = 0x12000, scoped, tag = 'internal scratch']
  %s0 = inlined_call_operand.hbm [shape: f32[16,128], index: 0, kind: input, shape index: {}]
  %s1 = inlined_call_operand.hbm [shape: bf16[3,128,128], index: 1, kind: input, shape index: {}]
  %s2 = inlined_call_operand.vmem [shape: f32[3,1,128], index: 2, kind: input, shape index: {}]
  %s3 = inlined_call_operand.hbm [shape: f32[16,128], index: 3, kind: output, shape index: {}]
  %s4 = sld [smem:[#allocation0]]
  $region53: #{tpu_custom_call.1} parent=0
    _
  %s6 = ssub.s32 1, %s4
  %s7 = scalar_select 0, %s6, %s4
  $region1: #{tpu_custom_call.1} parent=0
    #allocation2 [shape = 'u8[8192]{0}', space=vmem, size = 0x2000, scoped, tag = 'input window, operand 0']
    #allocation3 [shape = 's32[2]{0}', space=sflag, size = 0x8, scoped, tag = 'scoped memory for tpu_custom_call.1']
    #allocation4 [shape = 's32[2]{0}', space=sflag, size = 0x8, scoped, tag = 'scoped memory for tpu_custom_call.1']
    #allocation5 [shape = 'u8[98304]{0}', space=vmem, size = 0x18000, scoped, tag = 'input window, operand 1, single buffered']
    #allocation6 [shape = 's32[1]{0}', space=sflag, size = 0x4, scoped, tag = 'scoped memory for tpu_custom_call.1']
    #allocation7 [shape = 'u8[8192]{0}', space=vmem, size = 0x2000, scoped, tag = 'output window, operand 0']
    %8 = vsyncpa [#allocation3], 0
    %s9 = scalar_lea.sflag [#allocation3], 1
    %10 = vsyncpa %s9, 0
    %11 = vsyncpa [#allocation6], 0
    %12 = vsyncpa [#allocation4], 0
    %s13 = scalar_lea.sflag [#allocation4], 1
    %14 = vsyncpa %s13, 0
    loop: start=0, step=1, limit=4
    $region2: #{tpu_custom_call.1} parent=1 // loop_pre_header
      _
    $region3: #{tpu_custom_call.1} parent=1 // loop_header
      %s16 = sphi 0, %s20
      %p17 = scmp.ge.s32.totalorder %s16, 4
      %s26 = sphi 0, %s28
      %s29 = sphi 0, %s26
      %s30 = sphi 0, %s29
      %s46 = sphi 0, %s30
      %s50 = sphi 0, %s50
      %s52 = sphi 0, %s50
      %s53 = sphi 0, %s52
      %s67 = sphi 0, %s53
      %s71 = sphi 0, %s71
      %s73 = sphi 0, %s71
      %s74 = sphi 0, %s73
      %s88 = sphi 0, %s74
      %s94 = sphi 0, %s96
      %s97 = sphi 0, %s94
      %s98 = sphi 0, %s97
      %s114 = sphi 0, %s98
    $region4: #{tpu_custom_call.1} parent=1 // loop_header_branch
      %19 = sbr.rel (%p17) target = $region8
    $region5: #{tpu_custom_call.1} parent=1 // loop_body
      %s21 = ssub.s32 %s16, 1
      %s22 = ssub.s32 %s16, 2
      %s23 = sadd.s32 %s16, 1
      %s24 = ssub.s32 %s16, %s23
      %p25 = scmp.eq.s32.totalorder %s24, 0
      %s27 = sadd.s32 %s26, 1
      %s28 = scalar_select %p25, %s26, %s27
      %p31 = pneg %p25
      %p32 = scmp.eq.s32.totalorder %s16, 1
      %p33 = por %p31, %p32
      %p34 = scmp.ne.s32.totalorder %s26, %s29
      %p35 = scmp.eq.s32.totalorder %s16, 0
      %p36 = por %p34, %p35
      %p37 = scmp.ne.s32.totalorder %s26, %s29
      %p38 = scmp.eq.s32.totalorder %s21, 1
      %p39 = por %p37, %p38
      %p40 = scmp.ne.s32.totalorder %s29, %s30
      %p41 = scmp.eq.s32.totalorder %s21, 0
      %p42 = por %p40, %p41
      %p43 = scmp.ne.s32.totalorder %s29, %s30
      %p44 = scmp.eq.s32.totalorder %s22, 1
      %p45 = por %p43, %p44
      %p47 = scmp.ne.s32.totalorder %s30, %s46
      %p48 = scmp.eq.s32.totalorder %s22, 0
      %p49 = por %p47, %p48
      %s51 = sadd.s32 %s50, 1
      %p54 = scmp.eq.s32.totalorder %s16, 1
      %p55 = scmp.ne.s32.totalorder %s50, %s52
      %p56 = scmp.eq.s32.totalorder %s16, 0
      %p57 = por %p55, %p56
      %p58 = scmp.ne.s32.totalorder %s50, %s52
      %p59 = scmp.eq.s32.totalorder %s21, 1
      %p60 = por %p58, %p59
      %p61 = scmp.ne.s32.totalorder %s52, %s53
      %p62 = scmp.eq.s32.totalorder %s21, 0
      %p63 = por %p61, %p62
      %p64 = scmp.ne.s32.totalorder %s52, %s53
      %p65 = scmp.eq.s32.totalorder %s22, 1
      %p66 = por %p64, %p65
      %p68 = scmp.ne.s32.totalorder %s53, %s67
      %p69 = scmp.eq.s32.totalorder %s22, 0
      %p70 = por %p68, %p69
      %s72 = sadd.s32 %s71, 1
      %p75 = scmp.eq.s32.totalorder %s16, 1
      %p76 = scmp.ne.s32.totalorder %s71, %s73
      %p77 = scmp.eq.s32.totalorder %s16, 0
      %p78 = por %p76, %p77
      %p79 = scmp.ne.s32.totalorder %s71, %s73
      %p80 = scmp.eq.s32.totalorder %s21, 1
      %p81 = por %p79, %p80
      %p82 = scmp.ne.s32.totalorder %s73, %s74
      %p83 = scmp.eq.s32.totalorder %s21, 0
      %p84 = por %p82, %p83
      %p85 = scmp.ne.s32.totalorder %s73, %s74
      %p86 = scmp.eq.s32.totalorder %s22, 1
      %p87 = por %p85, %p86
      %p89 = scmp.ne.s32.totalorder %s74, %s88
      %p90 = scmp.eq.s32.totalorder %s22, 0
      %p91 = por %p89, %p90
      %s92 = ssub.s32 %s16, %s23
      %p93 = scmp.eq.s32.totalorder %s92, 0
      %s95 = sadd.s32 %s94, 1
      %s96 = scalar_select %p93, %s94, %s95
      %p99 = pneg %p93
      %p100 = scmp.eq.s32.totalorder %s16, 1
      %p101 = por %p99, %p100
      %p102 = scmp.ne.s32.totalorder %s94, %s97
      %p103 = scmp.eq.s32.totalorder %s16, 0
      %p104 = por %p102, %p103
      %p105 = scmp.ne.s32.totalorder %s94, %s97
      %p106 = scmp.eq.s32.totalorder %s21, 1
      %p107 = por %p105, %p106
      %p108 = scmp.ne.s32.totalorder %s97, %s98
      %p109 = scmp.eq.s32.totalorder %s21, 0
      %p110 = por %p108, %p109
      %p111 = scmp.ne.s32.totalorder %s97, %s98
      %p112 = scmp.eq.s32.totalorder %s22, 1
      %p113 = por %p111, %p112
      %p115 = scmp.ne.s32.totalorder %s98, %s114
      %p116 = scmp.eq.s32.totalorder %s22, 0
      %p117 = por %p115, %p116
      %p118 = scmp.le.s32.totalorder 1, %s16
      %p119 = scmp.lt.s32.totalorder %s16, 3
      %p120 = pnand %p118, %p119
      %p121 = pneg %p120
      // Predicated region
      $region9: #{tpu_custom_call.1} parent=5 // pred_check
        _
      $region10: #{tpu_custom_call.1} parent=5 // pred_check_branch
        %123 = sbr.rel (%p120) target = $region12
      $region11: #{tpu_custom_call.1} parent=5 // pred_region
        %s124 = ssub.s32 %s16, 1
        // Predicated region
        $region13: #{tpu_custom_call.1} parent=11 // pred_check
          %p125 = pneg %p63
        $region14: #{tpu_custom_call.1} parent=11 // pred_check_branch
          %127 = sbr.rel (%p125) target = $region16
        $region15: #{tpu_custom_call.1} parent=11 // pred_region
          %s129 = ssub.s32 3072, 3072
          %130 = vsyncadd [#allocation6], %s129
          %s131 = sshll.u32 [#allocation5], 4
          %s132 = int_to_ptr.vmem [resolvable:$true] %s131
          %137 = dma.hbm_to_vmem [thread:$0]  %s1, 3072, %s132, [#allocation6], 64, 64, 4
        $region16: #{tpu_custom_call.1} parent=11 // pred_fallthru
          _
        // Predicated region
        $region17: #{tpu_custom_call.1} parent=11 // pred_check
          %p138 = pneg %p84
        $region18: #{tpu_custom_call.1} parent=11 // pred_check_branch
          %140 = sbr.rel (%p138) target = $region20
        $region19: #{tpu_custom_call.1} parent=11 // pred_region
          _
        $region20: #{tpu_custom_call.1} parent=11 // pred_fallthru
          _
      $region12: #{tpu_custom_call.1} parent=5 // pred_fallthru
        _
      %p141 = scmp.lt.s32.totalorder %s16, 2
      // Predicated region
      $region21: #{tpu_custom_call.1} parent=5 // pred_check
        %p142 = pneg %p141
      $region22: #{tpu_custom_call.1} parent=5 // pred_check_branch
        %144 = sbr.rel (%p142) target = $region24
      $region23: #{tpu_custom_call.1} parent=5 // pred_region
        // Predicated region
        $region25: #{tpu_custom_call.1} parent=23 // pred_check
          %p145 = pneg %p36
        $region26: #{tpu_custom_call.1} parent=23 // pred_check_branch
          %147 = sbr.rel (%p145) target = $region28
        $region27: #{tpu_custom_call.1} parent=23 // pred_region
          %s148 = sand.u32 %s26, 1
          %s149 = scalar_lea.sflag [#allocation3], %s148
          %s150 = sand.u32 %s26, 1
          %s151 = smul.addr %s150, 8
          %s152 = scalar_lea.vmem [#allocation2], %s151
          %s154 = ssub.s32 128, 128
          %155 = vsyncadd %s149, %s154
          %s156 = smul.addr %s16, 128
          %s157 = scalar_lea.hbm %s0, %s156
          %s159 = sshll.u32 %s152, 4
          %s160 = int_to_ptr.vmem [resolvable:$true] %s159
          %162 = dma.hbm_to_vmem [thread:$0]  %s157, 128, %s160, %s149
        $region28: #{tpu_custom_call.1} parent=23 // pred_fallthru
          _
      $region24: #{tpu_custom_call.1} parent=5 // pred_fallthru
        _
      %p163 = scmp.le.s32.totalorder 1, %s16
      %p164 = scmp.lt.s32.totalorder %s16, 3
      %p165 = pnand %p163, %p164
      %p166 = pneg %p165
      // Predicated region
      $region29: #{tpu_custom_call.1} parent=5 // pred_check
        _
      $region30: #{tpu_custom_call.1} parent=5 // pred_check_branch
        %168 = sbr.rel (%p165) target = $region32
      $region31: #{tpu_custom_call.1} parent=5 // pred_region
        %s169 = ssub.s32 %s16, 1
        %s170 = sand.u32 %s29, 1
        %s171 = scalar_lea.sflag [#allocation3], %s170
        %s172 = sand.u32 %s29, 1
        %s173 = smul.addr %s172, 8
        %s174 = scalar_lea.vmem [#allocation2], %s173
        // Predicated region
        $region33: #{tpu_custom_call.1} parent=31 // pred_check
          %p175 = pneg %p42
        $region34: #{tpu_custom_call.1} parent=31 // pred_check_branch
          %177 = sbr.rel (%p175) target = $region36
        $region35: #{tpu_custom_call.1} parent=31 // pred_region
          %178 = dma.done %s171, 128
        $region36: #{tpu_custom_call.1} parent=31 // pred_fallthru
          _
        // Predicated region
        $region37: #{tpu_custom_call.1} parent=31 // pred_check
          %p179 = pneg %p63
        $region38: #{tpu_custom_call.1} parent=31 // pred_check_branch
          %181 = sbr.rel (%p179) target = $region40
        $region39: #{tpu_custom_call.1} parent=31 // pred_region
          %182 = dma.done [#allocation6], 3072
        $region40: #{tpu_custom_call.1} parent=31 // pred_fallthru
          _
        %s183 = sand.u32 %s29, 1
        %s184 = scalar_lea.sflag [#allocation3], %s183
        %s185 = sand.u32 %s29, 1
        %s186 = smul.addr %s185, 8
        %s187 = scalar_lea.vmem [#allocation2], %s186
        %p188 = pneg %p42
        %p189 = pneg %p39
        %p190 = pneg %p63
        %p191 = pneg %p60
        %p192 = pneg %p84
        %p193 = pneg %p81
        %p194 = pneg %p110
        %p195 = pneg %p107
        %s196 = sand.u32 %s97, 1
        %s197 = scalar_lea.sflag [#allocation4], %s196
        %s198 = sand.u32 %s97, 1
        %s199 = smul.addr %s198, 8
        %s200 = scalar_lea.vmem [#allocation7], %s199
        %v202 = vld [vmem:[%s174] sm:$0xff]
        %203 = vst [vmem:[%s200] sm:$0xff] %v202
        %v204 = vld [vmem:[%s200] sm:$0xff]
        %v205 = vpack.c.bf16 %v204, %v204
        %v206 = vld [vmem:[#allocation5] sm:$0xf]
        %v207 = vld [vmem:[#allocation5 + $0x4] sm:$0xf]
        %v208 = vld [vmem:[#allocation5 + $0x8] sm:$0xf]
        %v209 = vld [vmem:[#allocation5 + $0xc] sm:$0xf]
        %v210 = vld [vmem:[#allocation5 + $0x10] sm:$0xf]
        %v211 = vld [vmem:[#allocation5 + $0x14] sm:$0xf]
        %v212 = vld [vmem:[#allocation5 + $0x18] sm:$0xf]
        %v213 = vld [vmem:[#allocation5 + $0x1c] sm:$0xf]
        %v214 = vld [vmem:[#allocation5 + $0x20] sm:$0xf]
        %v215 = vld [vmem:[#allocation5 + $0x24] sm:$0xf]
        %v216 = vld [vmem:[#allocation5 + $0x28] sm:$0xf]
        %v217 = vld [vmem:[#allocation5 + $0x2c] sm:$0xf]
        %v218 = vld [vmem:[#allocation5 + $0x30] sm:$0xf]
        %v219 = vld [vmem:[#allocation5 + $0x34] sm:$0xf]
        %v220 = vld [vmem:[#allocation5 + $0x38] sm:$0xf]
        %v221 = vld [vmem:[#allocation5 + $0x3c] sm:$0xf]
        %v222 = vld [vmem:[%s2] sm:$0x1]
        %v224 = vlaneseq
        %v225 = vshrl.u32 %v224, 7
        %v226 = vsub.s32 0, %v225
        %v227 = vrot.slane %v222, %v226
        %v245 = vunpack.c.l.b16 %v206
        %v246 = vunpack.c.l.b16 %v207
        %v247 = vunpack.c.l.b16 %v208
        %v248 = vunpack.c.l.b16 %v209
        %v249 = vunpack.c.l.b16 %v210
        %v250 = vunpack.c.l.b16 %v211
        %v251 = vunpack.c.l.b16 %v212
        %v252 = vunpack.c.l.b16 %v213
        %v253 = vunpack.c.l.b16 %v214
        %v254 = vunpack.c.l.b16 %v215
        %v255 = vunpack.c.l.b16 %v216
        %v256 = vunpack.c.l.b16 %v217
        %v257 = vunpack.c.l.b16 %v218
        %v258 = vunpack.c.l.b16 %v219
        %v259 = vunpack.c.l.b16 %v220
        %v260 = vunpack.c.l.b16 %v221
        %v261 = vpack.c.b16 %v246, %v245
        %v262 = vpack.c.b16 %v248, %v247
        %v263 = vpack.c.b16 %v250, %v249
        %v264 = vpack.c.b16 %v252, %v251
        %v265 = vpack.c.b16 %v254, %v253
        %v266 = vpack.c.b16 %v256, %v255
        %v267 = vpack.c.b16 %v258, %v257
        %v268 = vpack.c.b16 %v260, %v259
        %277 = vmatprep.subr.bf16.mxu0 0
        %278 = vmatpush1.bf16.msra.mxu0 %v261
        %279 = vmatprep.subr.bf16.mxu0 0
        %280 = vmatpush1.bf16.msra.mxu0 %v262
        %281 = vmatprep.subr.bf16.mxu0 0
        %282 = vmatpush1.bf16.msra.mxu0 %v263
        %283 = vmatprep.subr.bf16.mxu0 0
        %284 = vmatpush1.bf16.msra.mxu0 %v264
        %285 = vmatprep.subr.bf16.mxu0 0
        %286 = vmatpush1.bf16.msra.mxu0 %v265
        %287 = vmatprep.subr.bf16.mxu0 0
        %288 = vmatpush1.bf16.msra.mxu0 %v266
        %289 = vmatprep.subr.bf16.mxu0 0
        %290 = vmatpush1.bf16.msra.mxu0 %v267
        %291 = vmatprep.subr.bf16.mxu0 0
        %292 = vmatpush1.bf16.msra.mxu0 %v268
        %293 = vmatprep.subr.bf16.mxu0 0
        %294 = vmatpush1.bf16.msra.mxu0 0
        %295 = vmatprep.subr.bf16.mxu0 0
        %296 = vmatpush1.bf16.msra.mxu0 0
        %297 = vmatprep.subr.bf16.mxu0 0
        %298 = vmatpush1.bf16.msra.mxu0 0
        %299 = vmatprep.subr.bf16.mxu0 0
        %300 = vmatpush1.bf16.msra.mxu0 0
        %301 = vmatprep.subr.bf16.mxu0 0
        %302 = vmatpush1.bf16.msra.mxu0 0
        %303 = vmatprep.subr.bf16.mxu0 0
        %304 = vmatpush1.bf16.msra.mxu0 0
        %305 = vmatprep.subr.bf16.mxu0 0
        %306 = vmatpush1.bf16.msra.mxu0 0
        %307 = vmatprep.subr.bf16.mxu0 0
        %308 = vmatpush1.bf16.msra.mxu0 0
        %309 = vmatprep.mubr.bf16.mxu0 0
        %310 = vmatmul.mubr.bf16.gmra.mrb[0].mxu0 %v205
        %v311 = vpop.f32.mrb[0].mxu0
        %v312 = vadd.f32 %v227, %v311
        %v313 = vpop.f32.mrb[0].mxu0
        %v314 = vpop.f32.mrb[0].mxu0
        %v315 = vpop.f32.mrb[0].mxu0
        %316 = vdwg.mxu0
        %317 = vst [vmem:[%s200] sm:$0xff] %v312
        %v318 = vld [vmem:[%s200] sm:$0xff]
        %v319 = vpack.c.bf16 %v318, %v318
        %s320 = scalar_lea.vmem [#allocation5], 64
        %v321 = vld [vmem:[%s320] sm:$0xf]
        %v322 = vld [vmem:[%s320 + $0x4] sm:$0xf]
        %v323 = vld [vmem:[%s320 + $0x8] sm:$0xf]
        %v324 = vld [vmem:[%s320 + $0xc] sm:$0xf]
        %v325 = vld [vmem:[%s320 + $0x10] sm:$0xf]
        %v326 = vld [vmem:[%s320 + $0x14] sm:$0xf]
        %v327 = vld [vmem:[%s320 + $0x18] sm:$0xf]
        %v328 = vld [vmem:[%s320 + $0x1c] sm:$0xf]
        %v329 = vld [vmem:[%s320 + $0x20] sm:$0xf]
        %v330 = vld [vmem:[%s320 + $0x24] sm:$0xf]
        %v331 = vld [vmem:[%s320 + $0x28] sm:$0xf]
        %v332 = vld [vmem:[%s320 + $0x2c] sm:$0xf]
        %v333 = vld [vmem:[%s320 + $0x30] sm:$0xf]
        %v334 = vld [vmem:[%s320 + $0x34] sm:$0xf]
        %v335 = vld [vmem:[%s320 + $0x38] sm:$0xf]
        %v336 = vld [vmem:[%s320 + $0x3c] sm:$0xf]
        %s337 = scalar_lea.vmem %s2, 1
        %v338 = vld [vmem:[%s337] sm:$0x1]
        %v340 = vlaneseq
        %v341 = vshrl.u32 %v340, 7
        %v342 = vsub.s32 0, %v341
        %v343 = vrot.slane %v338, %v342
        %v361 = vunpack.c.l.b16 %v321
        %v362 = vunpack.c.l.b16 %v322
        %v363 = vunpack.c.l.b16 %v323
        %v364 = vunpack.c.l.b16 %v324
        %v365 = vunpack.c.l.b16 %v325
        %v366 = vunpack.c.l.b16 %v326
        %v367 = vunpack.c.l.b16 %v327
        %v368 = vunpack.c.l.b16 %v328
        %v369 = vunpack.c.l.b16 %v329
        %v370 = vunpack.c.l.b16 %v330
        %v371 = vunpack.c.l.b16 %v331
        %v372 = vunpack.c.l.b16 %v332
        %v373 = vunpack.c.l.b16 %v333
        %v374 = vunpack.c.l.b16 %v334
        %v375 = vunpack.c.l.b16 %v335
        %v376 = vunpack.c.l.b16 %v336
        %v377 = vpack.c.b16 %v362, %v361
        %v378 = vpack.c.b16 %v364, %v363
        %v379 = vpack.c.b16 %v366, %v365
        %v380 = vpack.c.b16 %v368, %v367
        %v381 = vpack.c.b16 %v370, %v369
        %v382 = vpack.c.b16 %v372, %v371
        %v383 = vpack.c.b16 %v374, %v373
        %v384 = vpack.c.b16 %v376, %v375
        %393 = vmatprep.subr.bf16.mxu0 0
        %394 = vmatpush1.bf16.msra.mxu0 %v377
        %395 = vmatprep.subr.bf16.mxu0 0
        %396 = vmatpush1.bf16.msra.mxu0 %v378
        %397 = vmatprep.subr.bf16.mxu0 0
        %398 = vmatpush1.bf16.msra.mxu0 %v379
        %399 = vmatprep.subr.bf16.mxu0 0
        %400 = vmatpush1.bf16.msra.mxu0 %v380
        %401 = vmatprep.subr.bf16.mxu0 0
        %402 = vmatpush1.bf16.msra.mxu0 %v381
        %403 = vmatprep.subr.bf16.mxu0 0
        %404 = vmatpush1.bf16.msra.mxu0 %v382
        %405 = vmatprep.subr.bf16.mxu0 0
        %406 = vmatpush1.bf16.msra.mxu0 %v383
        %407 = vmatprep.subr.bf16.mxu0 0
        %408 = vmatpush1.bf16.msra.mxu0 %v384
        %409 = vmatprep.subr.bf16.mxu0 0
        %410 = vmatpush1.bf16.msra.mxu0 0
        %411 = vmatprep.subr.bf16.mxu0 0
        %412 = vmatpush1.bf16.msra.mxu0 0
        %413 = vmatprep.subr.bf16.mxu0 0
        %414 = vmatpush1.bf16.msra.mxu0 0
        %415 = vmatprep.subr.bf16.mxu0 0
        %416 = vmatpush1.bf16.msra.mxu0 0
        %417 = vmatprep.subr.bf16.mxu0 0
        %418 = vmatpush1.bf16.msra.mxu0 0
        %419 = vmatprep.subr.bf16.mxu0 0
        %420 = vmatpush1.bf16.msra.mxu0 0
        %421 = vmatprep.subr.bf16.mxu0 0
        %422 = vmatpush1.bf16.msra.mxu0 0
        %423 = vmatprep.subr.bf16.mxu0 0
        %424 = vmatpush1.bf16.msra.mxu0 0
        %425 = vmatprep.mubr.bf16.mxu0 0
        %426 = vmatmul.mubr.bf16.gmra.mrb[0].mxu0 %v319
        %v427 = vpop.f32.mrb[0].mxu0
        %v428 = vadd.f32 %v343, %v427
        %v429 = vpop.f32.mrb[0].mxu0
        %v430 = vpop.f32.mrb[0].mxu0
        %v431 = vpop.f32.mrb[0].mxu0
        %432 = vdwg.mxu0
        %433 = vst [vmem:[%s200] sm:$0xff] %v428
        %v434 = vld [vmem:[%s200] sm:$0xff]
        %v435 = vpack.c.bf16 %v434, %v434
        %s436 = scalar_lea.vmem [#allocation5], 128
        %v437 = vld [vmem:[%s436] sm:$0xf]
        %v438 = vld [vmem:[%s436 + $0x4] sm:$0xf]
        %v439 = vld [vmem:[%s436 + $0x8] sm:$0xf]
        %v440 = vld [vmem:[%s436 + $0xc] sm:$0xf]
        %v441 = vld [vmem:[%s436 + $0x10] sm:$0xf]
        %v442 = vld [vmem:[%s436 + $0x14] sm:$0xf]
        %v443 = vld [vmem:[%s436 + $0x18] sm:$0xf]
        %v444 = vld [vmem:[%s436 + $0x1c] sm:$0xf]
        %v445 = vld [vmem:[%s436 + $0x20] sm:$0xf]
        %v446 = vld [vmem:[%s436 + $0x24] sm:$0xf]
        %v447 = vld [vmem:[%s436 + $0x28] sm:$0xf]
        %v448 = vld [vmem:[%s436 + $0x2c] sm:$0xf]
        %v449 = vld [vmem:[%s436 + $0x30] sm:$0xf]
        %v450 = vld [vmem:[%s436 + $0x34] sm:$0xf]
        %v451 = vld [vmem:[%s436 + $0x38] sm:$0xf]
        %v452 = vld [vmem:[%s436 + $0x3c] sm:$0xf]
        %s453 = scalar_lea.vmem %s2, 2
        %v454 = vld [vmem:[%s453] sm:$0x1]
        %v456 = vlaneseq
        %v457 = vshrl.u32 %v456, 7
        %v458 = vsub.s32 0, %v457
        %v459 = vrot.slane %v454, %v458
        %v477 = vunpack.c.l.b16 %v437
        %v478 = vunpack.c.l.b16 %v438
        %v479 = vunpack.c.l.b16 %v439
        %v480 = vunpack.c.l.b16 %v440
        %v481 = vunpack.c.l.b16 %v441
        %v482 = vunpack.c.l.b16 %v442
        %v483 = vunpack.c.l.b16 %v443
        %v484 = vunpack.c.l.b16 %v444
        %v485 = vunpack.c.l.b16 %v445
        %v486 = vunpack.c.l.b16 %v446
        %v487 = vunpack.c.l.b16 %v447
        %v488 = vunpack.c.l.b16 %v448
        %v489 = vunpack.c.l.b16 %v449
        %v490 = vunpack.c.l.b16 %v450
        %v491 = vunpack.c.l.b16 %v451
        %v492 = vunpack.c.l.b16 %v452
        %v493 = vpack.c.b16 %v478, %v477
        %v494 = vpack.c.b16 %v480, %v479
        %v495 = vpack.c.b16 %v482, %v481
        %v496 = vpack.c.b16 %v484, %v483
        %v497 = vpack.c.b16 %v486, %v485
        %v498 = vpack.c.b16 %v488, %v487
        %v499 = vpack.c.b16 %v490, %v489
        %v500 = vpack.c.b16 %v492, %v491
        %509 = vmatprep.subr.bf16.mxu0 0
        %510 = vmatpush1.bf16.msra.mxu0 %v493
        %511 = vmatprep.subr.bf16.mxu0 0
        %512 = vmatpush1.bf16.msra.mxu0 %v494
        %513 = vmatprep.subr.bf16.mxu0 0
        %514 = vmatpush1.bf16.msra.mxu0 %v495
        %515 = vmatprep.subr.bf16.mxu0 0
        %516 = vmatpush1.bf16.msra.mxu0 %v496
        %517 = vmatprep.subr.bf16.mxu0 0
        %518 = vmatpush1.bf16.msra.mxu0 %v497
        %519 = vmatprep.subr.bf16.mxu0 0
        %520 = vmatpush1.bf16.msra.mxu0 %v498
        %521 = vmatprep.subr.bf16.mxu0 0
        %522 = vmatpush1.bf16.msra.mxu0 %v499
        %523 = vmatprep.subr.bf16.mxu0 0
        %524 = vmatpush1.bf16.msra.mxu0 %v500
        %525 = vmatprep.subr.bf16.mxu0 0
        %526 = vmatpush1.bf16.msra.mxu0 0
        %527 = vmatprep.subr.bf16.mxu0 0
        %528 = vmatpush1.bf16.msra.mxu0 0
        %529 = vmatprep.subr.bf16.mxu0 0
        %530 = vmatpush1.bf16.msra.mxu0 0
        %531 = vmatprep.subr.bf16.mxu0 0
        %532 = vmatpush1.bf16.msra.mxu0 0
        %533 = vmatprep.subr.bf16.mxu0 0
        %534 = vmatpush1.bf16.msra.mxu0 0
        %535 = vmatprep.subr.bf16.mxu0 0
        %536 = vmatpush1.bf16.msra.mxu0 0
        %537 = vmatprep.subr.bf16.mxu0 0
        %538 = vmatpush1.bf16.msra.mxu0 0
        %539 = vmatprep.subr.bf16.mxu0 0
        %540 = vmatpush1.bf16.msra.mxu0 0
        %541 = vmatprep.mubr.bf16.mxu0 0
        %542 = vmatmul.mubr.bf16.gmra.mrb[0].mxu0 %v435
        %v543 = vpop.f32.mrb[0].mxu0
        %v544 = vadd.f32 %v459, %v543
        %v545 = vpop.f32.mrb[0].mxu0
        %v546 = vpop.f32.mrb[0].mxu0
        %v547 = vpop.f32.mrb[0].mxu0
        %548 = vdwg.mxu0
        %549 = vst [vmem:[%s200] sm:$0xff] %v544
        %s550 = sand.u32 %s97, 1
        %s551 = scalar_lea.sflag [#allocation4], %s550
        %s552 = sand.u32 %s97, 1
        %s553 = smul.addr %s552, 8
        %s554 = scalar_lea.vmem [#allocation7], %s553
        // Predicated region
        $region41: #{tpu_custom_call.1} parent=31 // pred_check
          %p555 = pneg %p107
        $region42: #{tpu_custom_call.1} parent=31 // pred_check_branch
          %557 = sbr.rel (%p555) target = $region44
        $region43: #{tpu_custom_call.1} parent=31 // pred_region
          %s559 = ssub.s32 128, 128
          %560 = vsyncadd %s551, %s559
          %s561 = smul.addr %s21, 128
          %s562 = scalar_lea.hbm %s3, %s561
          %s564 = sshll.u32 %s554, 4
          %s565 = int_to_ptr.vmem [resolvable:$true] %s564
          %567 = dma.vmem_to_hbm [thread:$0]  %s565, 128, %s562, %s551
        $region44: #{tpu_custom_call.1} parent=31 // pred_fallthru
          _
      $region32: #{tpu_custom_call.1} parent=5 // pred_fallthru
        _
      %p568 = scmp.le.s32.totalorder 2, %s16
      // Predicated region
      $region45: #{tpu_custom_call.1} parent=5 // pred_check
        %p569 = pneg %p568
      $region46: #{tpu_custom_call.1} parent=5 // pred_check_branch
        %571 = sbr.rel (%p569) target = $region48
      $region47: #{tpu_custom_call.1} parent=5 // pred_region
        %s572 = ssub.s32 %s16, 2
        // Predicated region
        $region49: #{tpu_custom_call.1} parent=47 // pred_check
          %p573 = pneg %p113
        $region50: #{tpu_custom_call.1} parent=47 // pred_check_branch
          %575 = sbr.rel (%p573) target = $region52
        $region51: #{tpu_custom_call.1} parent=47 // pred_region
          %s576 = sand.u32 %s98, 1
          %s577 = scalar_lea.sflag [#allocation4], %s576
          %s578 = sand.u32 %s98, 1
          %s579 = smul.addr %s578, 8
          %s580 = scalar_lea.vmem [#allocation7], %s579
          %581 = dma.done %s577, 128
        $region52: #{tpu_custom_call.1} parent=47 // pred_fallthru
          _
      $region48: #{tpu_custom_call.1} parent=5 // pred_fallthru
        _
    $region6: #{tpu_custom_call.1} parent=1 // loop_footer
      %s20 = sadd.s32 1, %s16
    $region7: #{tpu_custom_call.1} parent=1 // loop_footer_branch
      %15 = sbr.rel target = $region3
    $region8: #{tpu_custom_call.1} parent=1 // loop_exit
      _
    %582 = vsyncpa [#allocation3], 1
    %s583 = scalar_lea.sflag [#allocation3], 1
    %584 = vsyncpa %s583, 1
    %585 = vsyncpa [#allocation6], 1
    %586 = vsyncpa [#allocation4], 1
    %s587 = scalar_lea.sflag [#allocation4], 1
    %588 = vsyncpa %s587, 1

</llo_original>
